<compile_context>
chip_gen: v5e
topology: v5e:2x2
jax: 0.10.0
libtpu: 0.0.40
codegen_flags: <defaults>
</compile_context>

<pallas_src>
import functools

import jax
import jax.numpy as jnp
from jax.experimental import pallas as pl
from jax.experimental.pallas import tpu as pltpu


# ---------------------------------------------------------------------------
# Kernel: one (batch, row-tile) grid point.
# ---------------------------------------------------------------------------
def _kd_kernel(alpha, inv_c, h_total, block_h, has_pred, has_mask,
               accumulate, mask_rows, *refs):
    refs = list(refs)
    x_ref = refs.pop(0)                              # (C, TH, W) student logits
    t_ref = refs.pop(0)                              # (C, TH, W) teacher logits
    pred_ref = refs.pop(0) if has_pred else None     # (TH, W)
    mask_ref = refs.pop(0) if has_mask else None     # (TH, W)
    out_ref = refs.pop(0)                            # (TH, W)

    # Upcast in-kernel; HBM traffic stays in the native dtype (e.g. bf16).
    x = x_ref[...].astype(jnp.float32)
    t = t_ref[...].astype(jnp.float32)
    if alpha != 1.0:
        t = t * alpha

    # Student log-softmax pieces along channels (leading axis).
    xm = jnp.max(x, axis=0)
    xs = x - xm
    lse = jnp.log(jnp.sum(jnp.exp(xs), axis=0))      # (TH, W)

    # Teacher softmax pieces along channels.
    tm = jnp.max(t, axis=0)
    te = jnp.exp(t - tm)
    s_te = jnp.sum(te, axis=0)                       # (TH, W)
    num = jnp.sum(xs * te, axis=0)                   # (TH, W)

    # mean_c(log_softmax(x) * softmax(alpha*t)) == (num / s_te - lse) / C  (exact division)
    loss = (num / s_te - lse) * inv_c                # (TH, W)

    gate = None
    if has_pred:
        gate = pred_ref[...].astype(jnp.float32)
    if has_mask:
        m = mask_ref[...].astype(jnp.float32)
        gate = m if gate is None else gate * m
    if gate is not None:
        loss = loss * gate

    if accumulate:
        if mask_rows:
            # Kill garbage rows of a partial tail block (jnp.where also kills NaNs).
            hi = pl.program_id(1)
            rows = jax.lax.broadcasted_iota(jnp.int32, loss.shape, 0)
            loss = jnp.where(rows + hi * block_h < h_total, loss, 0.0)

        @pl.when(pl.program_id(1) == 0)
        def _():
            out_ref[...] = loss

        @pl.when(pl.program_id(1) != 0)
        def _():
            out_ref[...] = out_ref[...] + loss
    else:
        # 'none': per-pixel map; partial tail blocks are bounds-masked on store.
        out_ref[...] = -loss


def _pick_block_h(h, c, w, itemsize_pair):
    """Largest row tile keeping the double-buffered logits blocks at ~<= 8 MiB."""
    budget = 8 * 1024 * 1024
    per_row = 2 * c * w * itemsize_pair            # 2 buffers * (student + teacher) bytes/row
    th = budget // max(per_row, 1)
    if th >= h:
        return h                                   # whole image per block, no row masking
    return max(8, (int(th) // 8) * 8)


# ---------------------------------------------------------------------------
# Public entry point: mirrors KnowledgeDistillationLoss.forward
# ---------------------------------------------------------------------------
def knowledge_distillation_loss(inputs, targets, pred_labels=None, mask=None,
                                reduction="mean", alpha=1.0, block_h=None):
    B, C, H, W = targets.shape
    if inputs.shape[1] < C:
        raise ValueError("inputs must have at least as many channels as targets")

    has_pred = pred_labels is not None
    has_mask = mask is not None
    accumulate = reduction in ("mean", "sum")

    itemsize_pair = inputs.dtype.itemsize + targets.dtype.itemsize
    th = block_h if block_h is not None else _pick_block_h(H, C, W, itemsize_pair)
    if th >= H:
        th = H
    else:
        th = max(8, (int(th) // 8) * 8)            # second-minor dim: multiple of 8 or full H
    n_h = -(-H // th)
    mask_rows = (n_h * th) != H

    grid = (B, n_h)

    # Channel "narrow" happens here for free: channel-block 0 of size C over C_in channels.
    in_specs = [
        pl.BlockSpec((None, C, th, W), lambda b, h: (b, 0, h, 0)),
        pl.BlockSpec((None, C, th, W), lambda b, h: (b, 0, h, 0)),
    ]
    operands = [inputs, targets]
    if has_pred:
        in_specs.append(pl.BlockSpec((None, th, W), lambda b, h: (b, h, 0)))
        operands.append(pred_labels)
    if has_mask:
        in_specs.append(pl.BlockSpec((None, th, W), lambda b, h: (b, h, 0)))
        operands.append(mask)

    if accumulate:
        # Tiny per-batch accumulator; spatial reduction finished by a negligible JAX sum.
        out_shape = jax.ShapeDtypeStruct((B, th, W), jnp.float32)
        out_spec = pl.BlockSpec((None, th, W), lambda b, h: (b, 0, 0))
        semantics = ("parallel", "arbitrary")
    else:
        out_shape = jax.ShapeDtypeStruct((B, H, W), jnp.float32)
        out_spec = pl.BlockSpec((None, th, W), lambda b, h: (b, h, 0))
        semantics = ("parallel", "parallel")

    gate_bytes = sum(op.dtype.itemsize for op in operands[2:])
    vmem_needed = (2 * C * th * W * itemsize_pair          # double-buffered logits
                   + 2 * th * W * max(gate_bytes, 0)        # double-buffered gates
                   + (1 if accumulate else 2) * th * W * 4) # output block(s)
    vmem_limit = int(min(max(vmem_needed + (8 << 20), 32 << 20), 48 << 20))

    kernel = functools.partial(_kd_kernel, float(alpha), 1.0 / C, H, th,
                               has_pred, has_mask, accumulate, mask_rows)

    out = pl.pallas_call(
        kernel,
        out_shape=out_shape,
        grid_spec=pltpu.PrefetchScalarGridSpec(
            num_scalar_prefetch=0,
            grid=grid,
            in_specs=in_specs,
            out_specs=out_spec),
        compiler_params=pltpu.CompilerParams(
            dimension_semantics=semantics,
            vmem_limit_bytes=vmem_limit),
    )(*operands)

    if reduction == "mean":
        return -jnp.sum(out) / (B * H * W)
    elif reduction == "sum":
        return -jnp.sum(out)
    else:
        return out   # already negated in-kernel; shape (B, H, W), f32


if __name__ == "__main__":
    key = jax.random.PRNGKey(0)
    k1, k2, k3, k4 = jax.random.split(key, 4)

    B, C_in, C, H, W = 2, 6, 4, 16, 16
    inputs = jax.random.normal(k1, (B, C_in, H, W), dtype=jnp.float32)
    targets = jax.random.normal(k2, (B, C, H, W), dtype=jnp.float32)
    pred_labels = (jax.random.uniform(k3, (B, H, W)) > 0.3).astype(jnp.float32)
    mask = (jax.random.uniform(k4, (B, H, W)) > 0.2).astype(jnp.float32)

    # Pure-JAX reference (same math as the PyTorch module).
    def ref(inp, tgt, pl_=None, m_=None, reduction="mean", alpha=1.0):
        x = inp[:, :tgt.shape[1]].astype(jnp.float32)
        logp = jax.nn.log_softmax(x, axis=1)
        lab = jax.nn.softmax(tgt.astype(jnp.float32) * alpha, axis=1)
        l = jnp.mean(logp * lab, axis=1)
        if pl_ is not None:
            l = l * pl_.astype(jnp.float32)
        if m_ is not None:
            l = l * m_.astype(jnp.float32)
        if reduction == "mean":
            return -jnp.mean(l)
        if reduction == "sum":
            return -jnp.sum(l)
        return -l

    # 1) mean, with pred_labels + mask.
    fwd_mean = jax.jit(functools.partial(knowledge_distillation_loss,
                                         reduction="mean", alpha=1.0))
    out = fwd_mean(inputs, targets, pred_labels, mask)
    jax.block_until_ready(out)
    assert jnp.allclose(out, ref(inputs, targets, pred_labels, mask, "mean"),
                        rtol=1e-4, atol=1e-5), "mean mismatch"

    # 2) sum, no gates.
    fwd_sum = jax.jit(functools.partial(knowledge_distillation_loss, reduction="sum"))
    out = fwd_sum(inputs, targets)
    jax.block_until_ready(out)
    assert jnp.allclose(out, ref(inputs, targets, reduction="sum"),
                        rtol=1e-4, atol=1e-3), "sum mismatch"

    # 3) none, mask only.
    fwd_none = jax.jit(functools.partial(knowledge_distillation_loss, reduction="none"))
    out = fwd_none(inputs, targets, None, mask)
    jax.block_until_ready(out)
    r = ref(inputs, targets, None, mask, "none")
    assert out.shape == (B, H, W)
    assert jnp.allclose(out, r, rtol=1e-4, atol=1e-5), "none mismatch"

    # 4) bf16 logits (native-dtype HBM path), alpha != 1, forced row tiling with a
    #    partial tail block (exercises the in-kernel row mask + accumulator path).
    H2, W2 = 20, 16
    inputs2 = jax.random.normal(k1, (B, C_in, H2, W2), dtype=jnp.bfloat16)
    targets2 = jax.random.normal(k2, (B, C, H2, W2), dtype=jnp.bfloat16)
    fwd2 = jax.jit(functools.partial(knowledge_distillation_loss,
                                     reduction="mean", alpha=0.5, block_h=8))
    out2 = fwd2(inputs2, targets2)
    jax.block_until_ready(out2)
    r2 = ref(inputs2, targets2, reduction="mean", alpha=0.5)
    assert jnp.allclose(out2, r2, rtol=2e-2, atol=2e-2), "bf16/tiled mismatch"

    print("KERNEL_OK")
</pallas_src>

<mosaic_0001>
module attributes {stable_mosaic.version = 11 : i64} {
  func.func @_kd_kernel(%arg0: i32, %arg1: i32, %arg2: memref<1x4x16x16xf32, #tpu.memory_space<vmem>>, %arg3: memref<1x4x16x16xf32, #tpu.memory_space<vmem>>, %arg4: memref<1x16x16xf32, #tpu.memory_space<vmem>>, %arg5: memref<1x16x16xf32, #tpu.memory_space<vmem>>, %arg6: memref<1x16x16xf32, #tpu.memory_space<vmem>>) attributes {dimension_semantics = [#tpu.dimension_semantics<parallel>, #tpu.dimension_semantics<arbitrary>], iteration_bounds = array<i64: 2, 1>, scalar_prefetch = 0 : i64, scratch_operands = 0 : i64, tpu.core_type = #tpu.core_type<tc>, window_params = [{transform_indices = @transform_0, window_bounds = array<i64: 1, 4, 16, 16>}, {transform_indices = @transform_1, window_bounds = array<i64: 1, 4, 16, 16>}, {transform_indices = @transform_2, window_bounds = array<i64: 1, 16, 16>}, {transform_indices = @transform_3, window_bounds = array<i64: 1, 16, 16>}, {transform_indices = @transform_4, window_bounds = array<i64: 1, 16, 16>}]} {
    %c0 = arith.constant 0 : index
    %c0_0 = arith.constant 0 : index
    %c0_1 = arith.constant 0 : index
    %c0_2 = arith.constant 0 : index
    %0 = vector.load %arg2[%c0, %c0_0, %c0_1, %c0_2] : memref<1x4x16x16xf32, #tpu.memory_space<vmem>>, vector<1x4x16x16xf32>
    %1 = vector.shape_cast %0 : vector<1x4x16x16xf32> to vector<4x16x16xf32>
    %c0_3 = arith.constant 0 : index
    %c0_4 = arith.constant 0 : index
    %c0_5 = arith.constant 0 : index
    %c0_6 = arith.constant 0 : index
    %2 = vector.load %arg3[%c0_3, %c0_4, %c0_5, %c0_6] : memref<1x4x16x16xf32, #tpu.memory_space<vmem>>, vector<1x4x16x16xf32>
    %3 = vector.shape_cast %2 : vector<1x4x16x16xf32> to vector<4x16x16xf32>
    %cst = arith.constant dense<0xFF800000> : vector<16x16xf32>
    %4 = vector.multi_reduction <maximumf>, %1, %cst [0] : vector<4x16x16xf32> to vector<16x16xf32>
    %5 = vector.shape_cast %4 : vector<16x16xf32> to vector<1x16x16xf32>
    %6 = vector.broadcast %5 : vector<1x16x16xf32> to vector<4x16x16xf32>
    %7 = arith.subf %1, %6 : vector<4x16x16xf32>
    %8 = math.exp %7 : vector<4x16x16xf32>
    %cst_7 = arith.constant dense<0.000000e+00> : vector<16x16xf32>
    %9 = vector.multi_reduction <add>, %8, %cst_7 [0] : vector<4x16x16xf32> to vector<16x16xf32>
    %10 = math.log %9 : vector<16x16xf32>
    %cst_8 = arith.constant dense<0xFF800000> : vector<16x16xf32>
    %11 = vector.multi_reduction <maximumf>, %3, %cst_8 [0] : vector<4x16x16xf32> to vector<16x16xf32>
    %12 = vector.shape_cast %11 : vector<16x16xf32> to vector<1x16x16xf32>
    %13 = vector.broadcast %12 : vector<1x16x16xf32> to vector<4x16x16xf32>
    %14 = arith.subf %3, %13 : vector<4x16x16xf32>
    %15 = math.exp %14 : vector<4x16x16xf32>
    %cst_9 = arith.constant dense<0.000000e+00> : vector<16x16xf32>
    %16 = vector.multi_reduction <add>, %15, %cst_9 [0] : vector<4x16x16xf32> to vector<16x16xf32>
    %17 = arith.mulf %7, %15 : vector<4x16x16xf32>
    %cst_10 = arith.constant dense<0.000000e+00> : vector<16x16xf32>
    %18 = vector.multi_reduction <add>, %17, %cst_10 [0] : vector<4x16x16xf32> to vector<16x16xf32>
    %19 = arith.divf %18, %16 : vector<16x16xf32>
    %20 = arith.subf %19, %10 : vector<16x16xf32>
    %cst_11 = arith.constant 2.500000e-01 : f32
    %21 = vector.broadcast %cst_11 : f32 to vector<16x16xf32>
    %22 = arith.mulf %20, %21 : vector<16x16xf32>
    %c0_12 = arith.constant 0 : index
    %c0_13 = arith.constant 0 : index
    %c0_14 = arith.constant 0 : index
    %23 = vector.load %arg4[%c0_12, %c0_13, %c0_14] : memref<1x16x16xf32, #tpu.memory_space<vmem>>, vector<1x16x16xf32>
    %24 = vector.shape_cast %23 : vector<1x16x16xf32> to vector<16x16xf32>
    %c0_15 = arith.constant 0 : index
    %c0_16 = arith.constant 0 : index
    %c0_17 = arith.constant 0 : index
    %25 = vector.load %arg5[%c0_15, %c0_16, %c0_17] : memref<1x16x16xf32, #tpu.memory_space<vmem>>, vector<1x16x16xf32>
    %26 = vector.shape_cast %25 : vector<1x16x16xf32> to vector<16x16xf32>
    %27 = arith.mulf %24, %26 : vector<16x16xf32>
    %28 = arith.mulf %22, %27 : vector<16x16xf32>
    %c0_i32 = arith.constant 0 : i32
    %29 = arith.cmpi eq, %arg1, %c0_i32 : i32
    %30 = arith.extui %29 : i1 to i32
    %c0_i32_18 = arith.constant 0 : i32
    %31 = arith.cmpi ne, %30, %c0_i32_18 : i32
    scf.if %31 {
      %c0_21 = arith.constant 0 : index
      %c0_22 = arith.constant 0 : index
      %c0_23 = arith.constant 0 : index
      %35 = vector.load %arg6[%c0_21, %c0_22, %c0_23] : memref<1x16x16xf32, #tpu.memory_space<vmem>>, vector<1x16x16xf32>
      %36 = vector.shape_cast %35 : vector<1x16x16xf32> to vector<16x16xf32>
      %37 = vector.shape_cast %28 : vector<16x16xf32> to vector<1x16x16xf32>
      tpu.vector_store %arg6[%c0_21, %c0_22, %c0_23], %37 {strides = array<i32>} : memref<1x16x16xf32, #tpu.memory_space<vmem>>, vector<1x16x16xf32>,
    } else {
    }
    %c0_i32_19 = arith.constant 0 : i32
    %32 = arith.cmpi ne, %arg1, %c0_i32_19 : i32
    %33 = arith.extui %32 : i1 to i32
    %c0_i32_20 = arith.constant 0 : i32
    %34 = arith.cmpi ne, %33, %c0_i32_20 : i32
    scf.if %34 {
      %c0_21 = arith.constant 0 : index
      %c0_22 = arith.constant 0 : index
      %c0_23 = arith.constant 0 : index
      %35 = vector.load %arg6[%c0_21, %c0_22, %c0_23] : memref<1x16x16xf32, #tpu.memory_space<vmem>>, vector<1x16x16xf32>
      %36 = vector.shape_cast %35 : vector<1x16x16xf32> to vector<16x16xf32>
      %37 = arith.addf %36, %28 : vector<16x16xf32>
      %c0_24 = arith.constant 0 : index
      %c0_25 = arith.constant 0 : index
      %c0_26 = arith.constant 0 : index
      %38 = vector.load %arg6[%c0_24, %c0_25, %c0_26] : memref<1x16x16xf32, #tpu.memory_space<vmem>>, vector<1x16x16xf32>
      %39 = vector.shape_cast %38 : vector<1x16x16xf32> to vector<16x16xf32>
      %40 = vector.shape_cast %37 : vector<16x16xf32> to vector<1x16x16xf32>
      tpu.vector_store %arg6[%c0_24, %c0_25, %c0_26], %40 {strides = array<i32>} : memref<1x16x16xf32, #tpu.memory_space<vmem>>, vector<1x16x16xf32>,
    } else {
    }
    return
  }
  func.func @transform_0(%arg0: i32, %arg1: i32) -> (i32, i32, i32, i32) {
    %c0_i32 = arith.constant 0 : i32
    %c0_i32_0 = arith.constant 0 : i32
    %c0_i32_1 = arith.constant 0 : i32
    return %arg0, %c0_i32, %arg1, %c0_i32_0 : i32, i32, i32, i32
  }
  func.func @transform_1(%arg0: i32, %arg1: i32) -> (i32, i32, i32, i32) {
    %c0_i32 = arith.constant 0 : i32
    %c0_i32_0 = arith.constant 0 : i32
    %c0_i32_1 = arith.constant 0 : i32
    return %arg0, %c0_i32, %arg1, %c0_i32_0 : i32, i32, i32, i32
  }
  func.func @transform_2(%arg0: i32, %arg1: i32) -> (i32, i32, i32) {
    %c0_i32 = arith.constant 0 : i32
    %c0_i32_0 = arith.constant 0 : i32
    return %arg0, %arg1, %c0_i32 : i32, i32, i32
  }
  func.func @transform_3(%arg0: i32, %arg1: i32) -> (i32, i32, i32) {
    %c0_i32 = arith.constant 0 : i32
    %c0_i32_0 = arith.constant 0 : i32
    return %arg0, %arg1, %c0_i32 : i32, i32, i32
  }
  func.func @transform_4(%arg0: i32, %arg1: i32) -> (i32, i32, i32) {
    %c0_i32 = arith.constant 0 : i32
    %c0_i32_0 = arith.constant 0 : i32
    %c0_i32_1 = arith.constant 0 : i32
    return %arg0, %c0_i32, %c0_i32_0 : i32, i32, i32
  }
}

</mosaic_0001>

<llo_original>
// kernel: knowledge_distillation_loss.1
$region0: #{knowledge_distillation_loss.1}
  #allocation0 [shape = 'u32[]', space=smem, size = 0x4, offset = 0x4, fixed_abs, tag = 'smem constant byte address 0x4 - core index']
  #allocation1 [shape = 'u32[72,128]{1,0:T(1,128)}', space=vmem, size = 0x9000, scoped, tag = 'internal scratch']
  %s0 = inlined_call_operand.hbm [shape: f32[2,6,16,16], index: 0, kind: input, shape index: {}]
  %s1 = inlined_call_operand.hbm [shape: f32[2,4,16,16], index: 1, kind: input, shape index: {}]
  %s2 = inlined_call_operand.hbm [shape: f32[2,16,16], index: 2, kind: input, shape index: {}]
  %s3 = inlined_call_operand.hbm [shape: f32[2,16,16], index: 3, kind: input, shape index: {}]
  %s4 = inlined_call_operand.vmem [shape: f32[2,16,16], index: 4, kind: output, shape index: {}]
  %s5 = sld [smem:[#allocation0]]
  $region73: #{knowledge_distillation_loss.1} parent=0
    _
  %s7 = ssub.s32 1, %s5
  %s8 = scalar_select 0, %s7, %s5
  $region1: #{knowledge_distillation_loss.1} parent=0
    #allocation2 [shape = 'u8[65536]{0}', space=vmem, size = 0x10000, scoped, tag = 'input window, operand 0']
    #allocation3 [shape = 's32[2]{0}', space=sflag, size = 0x8, scoped, tag = 'scoped memory for knowledge_distillation_loss.1']
    #allocation4 [shape = 'u8[65536]{0}', space=vmem, size = 0x10000, scoped, tag = 'input window, operand 1']
    #allocation5 [shape = 's32[2]{0}', space=sflag, size = 0x8, scoped, tag = 'scoped memory for knowledge_distillation_loss.1']
    #allocation6 [shape = 'u8[16384]{0}', space=vmem, size = 0x4000, scoped, tag = 'input window, operand 2']
    #allocation7 [shape = 'u8[16384]{0}', space=vmem, size = 0x4000, scoped, tag = 'input window, operand 3']
    #allocation8 [shape = 's32[2]{0}', space=sflag, size = 0x8, scoped, tag = 'scoped memory for knowledge_distillation_loss.1']
    %9 = vsyncpa [#allocation3], 0
    %s10 = scalar_lea.sflag [#allocation3], 1
    %11 = vsyncpa %s10, 0
    %12 = vsyncpa [#allocation5], 0
    %s13 = scalar_lea.sflag [#allocation5], 1
    %14 = vsyncpa %s13, 0
    %15 = vsyncpa [#allocation8], 0
    %s16 = scalar_lea.sflag [#allocation8], 1
    %17 = vsyncpa %s16, 0
    loop: start=0, step=1, limit=4
    $region2: #{knowledge_distillation_loss.1} parent=1 // loop_pre_header
      _
    $region3: #{knowledge_distillation_loss.1} parent=1 // loop_header
      %s19 = sphi 0, %s23
      %p20 = scmp.ge.s32.totalorder %s19, 4
      %s26 = sphi 0, %s38
      %s27 = sphi 0, %s34
      %s28 = sphi 0, %s26
      %s29 = sphi 0, %s27
      %s30 = sphi 0, %s28
      %s31 = sphi 0, %s29
      %s43 = sphi 0, %s45
      %s46 = sphi 0, %s43
      %s47 = sphi 0, %s46
      %s63 = sphi 0, %s47
      %s71 = sphi 0, %s73
      %s74 = sphi 0, %s71
      %s75 = sphi 0, %s74
      %s91 = sphi 0, %s75
      %s99 = sphi 0, %s101
      %s102 = sphi 0, %s99
      %s103 = sphi 0, %s102
      %s119 = sphi 0, %s103
      %s127 = sphi 0, %s129
      %s130 = sphi 0, %s127
      %s131 = sphi 0, %s130
      %s147 = sphi 0, %s131
      %s153 = sphi 0, %s155
      %s156 = sphi 0, %s153
      %s157 = sphi 0, %s156
      %s173 = sphi 0, %s157
    $region4: #{knowledge_distillation_loss.1} parent=1 // loop_header_branch
      %22 = sbr.rel (%p20) target = $region8
    $region5: #{knowledge_distillation_loss.1} parent=1 // loop_body
      %s24 = ssub.s32 %s19, 1
      %s25 = ssub.s32 %s19, 2
      %s32 = sadd.s32 1, %s27
      %p33 = scmp.ge.s32.totalorder %s32, 1
      %s34 = scalar_select %p33, 0, %s32
      %s35 = sadd.s32 1, %s26
      %s36 = scalar_select %p33, %s35, %s26
      %p37 = scmp.ge.s32.totalorder %s36, 2
      %s38 = scalar_select %p37, 0, %s36
      %s39 = ssub.s32 %s26, %s38
      %s40 = ssub.s32 %s27, %s34
      %s41 = sor.u32 %s39, %s40
      %p42 = scmp.eq.s32.totalorder %s41, 0
      %s44 = sadd.s32 %s43, 1
      %s45 = scalar_select %p42, %s43, %s44
      %p48 = pneg %p42
      %p49 = scmp.eq.s32.totalorder %s19, 1
      %p50 = por %p48, %p49
      %p51 = scmp.ne.s32.totalorder %s43, %s46
      %p52 = scmp.eq.s32.totalorder %s19, 0
      %p53 = por %p51, %p52
      %p54 = scmp.ne.s32.totalorder %s43, %s46
      %p55 = scmp.eq.s32.totalorder %s24, 1
      %p56 = por %p54, %p55
      %p57 = scmp.ne.s32.totalorder %s46, %s47
      %p58 = scmp.eq.s32.totalorder %s24, 0
      %p59 = por %p57, %p58
      %p60 = scmp.ne.s32.totalorder %s46, %s47
      %p61 = scmp.eq.s32.totalorder %s25, 1
      %p62 = por %p60, %p61
      %p64 = scmp.ne.s32.totalorder %s47, %s63
      %p65 = scmp.eq.s32.totalorder %s25, 0
      %p66 = por %p64, %p65
      %s67 = ssub.s32 %s26, %s38
      %s68 = ssub.s32 %s27, %s34
      %s69 = sor.u32 %s67, %s68
      %p70 = scmp.eq.s32.totalorder %s69, 0
      %s72 = sadd.s32 %s71, 1
      %s73 = scalar_select %p70, %s71, %s72
      %p76 = pneg %p70
      %p77 = scmp.eq.s32.totalorder %s19, 1
      %p78 = por %p76, %p77
      %p79 = scmp.ne.s32.totalorder %s71, %s74
      %p80 = scmp.eq.s32.totalorder %s19, 0
      %p81 = por %p79, %p80
      %p82 = scmp.ne.s32.totalorder %s71, %s74
      %p83 = scmp.eq.s32.totalorder %s24, 1
      %p84 = por %p82, %p83
      %p85 = scmp.ne.s32.totalorder %s74, %s75
      %p86 = scmp.eq.s32.totalorder %s24, 0
      %p87 = por %p85, %p86
      %p88 = scmp.ne.s32.totalorder %s74, %s75
      %p89 = scmp.eq.s32.totalorder %s25, 1
      %p90 = por %p88, %p89
      %p92 = scmp.ne.s32.totalorder %s75, %s91
      %p93 = scmp.eq.s32.totalorder %s25, 0
      %p94 = por %p92, %p93
      %s95 = ssub.s32 %s26, %s38
      %s96 = ssub.s32 %s27, %s34
      %s97 = sor.u32 %s95, %s96
      %p98 = scmp.eq.s32.totalorder %s97, 0
      %s100 = sadd.s32 %s99, 1
      %s101 = scalar_select %p98, %s99, %s100
      %p104 = pneg %p98
      %p105 = scmp.eq.s32.totalorder %s19, 1
      %p106 = por %p104, %p105
      %p107 = scmp.ne.s32.totalorder %s99, %s102
      %p108 = scmp.eq.s32.totalorder %s19, 0
      %p109 = por %p107, %p108
      %p110 = scmp.ne.s32.totalorder %s99, %s102
      %p111 = scmp.eq.s32.totalorder %s24, 1
      %p112 = por %p110, %p111
      %p113 = scmp.ne.s32.totalorder %s102, %s103
      %p114 = scmp.eq.s32.totalorder %s24, 0
      %p115 = por %p113, %p114
      %p116 = scmp.ne.s32.totalorder %s102, %s103
      %p117 = scmp.eq.s32.totalorder %s25, 1
      %p118 = por %p116, %p117
      %p120 = scmp.ne.s32.totalorder %s103, %s119
      %p121 = scmp.eq.s32.totalorder %s25, 0
      %p122 = por %p120, %p121
      %s123 = ssub.s32 %s26, %s38
      %s124 = ssub.s32 %s27, %s34
      %s125 = sor.u32 %s123, %s124
      %p126 = scmp.eq.s32.totalorder %s125, 0
      %s128 = sadd.s32 %s127, 1
      %s129 = scalar_select %p126, %s127, %s128
      %p132 = pneg %p126
      %p133 = scmp.eq.s32.totalorder %s19, 1
      %p134 = por %p132, %p133
      %p135 = scmp.ne.s32.totalorder %s127, %s130
      %p136 = scmp.eq.s32.totalorder %s19, 0
      %p137 = por %p135, %p136
      %p138 = scmp.ne.s32.totalorder %s127, %s130
      %p139 = scmp.eq.s32.totalorder %s24, 1
      %p140 = por %p138, %p139
      %p141 = scmp.ne.s32.totalorder %s130, %s131
      %p142 = scmp.eq.s32.totalorder %s24, 0
      %p143 = por %p141, %p142
      %p144 = scmp.ne.s32.totalorder %s130, %s131
      %p145 = scmp.eq.s32.totalorder %s25, 1
      %p146 = por %p144, %p145
      %p148 = scmp.ne.s32.totalorder %s131, %s147
      %p149 = scmp.eq.s32.totalorder %s25, 0
      %p150 = por %p148, %p149
      %s151 = ssub.s32 %s26, %s38
      %p152 = scmp.eq.s32.totalorder %s151, 0
      %s154 = sadd.s32 %s153, 1
      %s155 = scalar_select %p152, %s153, %s154
      %p158 = pneg %p152
      %p159 = scmp.eq.s32.totalorder %s19, 1
      %p160 = por %p158, %p159
      %p161 = scmp.ne.s32.totalorder %s153, %s156
      %p162 = scmp.eq.s32.totalorder %s19, 0
      %p163 = por %p161, %p162
      %p164 = scmp.ne.s32.totalorder %s153, %s156
      %p165 = scmp.eq.s32.totalorder %s24, 1
      %p166 = por %p164, %p165
      %p167 = scmp.ne.s32.totalorder %s156, %s157
      %p168 = scmp.eq.s32.totalorder %s24, 0
      %p169 = por %p167, %p168
      %p170 = scmp.ne.s32.totalorder %s156, %s157
      %p171 = scmp.eq.s32.totalorder %s25, 1
      %p172 = por %p170, %p171
      %p174 = scmp.ne.s32.totalorder %s157, %s173
      %p175 = scmp.eq.s32.totalorder %s25, 0
      %p176 = por %p174, %p175
      %p177 = scmp.le.s32.totalorder 1, %s19
      %p178 = scmp.lt.s32.totalorder %s19, 3
      %p179 = pnand %p177, %p178
      %p180 = pneg %p179
      // Predicated region
      $region9: #{knowledge_distillation_loss.1} parent=5 // pred_check
        _
      $region10: #{knowledge_distillation_loss.1} parent=5 // pred_check_branch
        %182 = sbr.rel (%p179) target = $region12
      $region11: #{knowledge_distillation_loss.1} parent=5 // pred_region
        %s183 = ssub.s32 %s19, 1
      $region12: #{knowledge_distillation_loss.1} parent=5 // pred_fallthru
        _
      %p184 = scmp.lt.s32.totalorder %s19, 2
      // Predicated region
      $region13: #{knowledge_distillation_loss.1} parent=5 // pred_check
        %p185 = pneg %p184
      $region14: #{knowledge_distillation_loss.1} parent=5 // pred_check_branch
        %187 = sbr.rel (%p185) target = $region16
      $region15: #{knowledge_distillation_loss.1} parent=5 // pred_region
        // Predicated region
        $region17: #{knowledge_distillation_loss.1} parent=15 // pred_check
          %p188 = pneg %p53
        $region18: #{knowledge_distillation_loss.1} parent=15 // pred_check_branch
          %190 = sbr.rel (%p188) target = $region20
        $region19: #{knowledge_distillation_loss.1} parent=15 // pred_region
          %s191 = sand.u32 %s43, 1
          %s192 = scalar_lea.sflag [#allocation3], %s191
          %s193 = sand.u32 %s43, 1
          %s194 = smul.addr %s193, 64
          %s195 = scalar_lea.vmem [#allocation2], %s194
          %s196 = smul.u32 2, %s27
          %198 = vsyncadd %s192, 0
          %s199 = smul.addr %s26, 12
          %s200 = sadd.s32 %s196, %s199
          %s201 = smul.addr %s200, 8
          %s202 = scalar_lea.hbm %s0, %s201
          %s203 = sshll.u32 %s202, 4
          %s204 = int_to_ptr.hbm [resolvable:$true] %s203
          %s205 = sshll.u32 %s195, 4
          %s206 = int_to_ptr.vmem [resolvable:$true] %s205
          %211 = dma.hbm_to_vmem [thread:$0]  %s204, 1024, %s206, %s192, 128, 128, 8
        $region20: #{knowledge_distillation_loss.1} parent=15 // pred_fallthru
          _
        // Predicated region
        $region21: #{knowledge_distillation_loss.1} parent=15 // pred_check
          %p212 = pneg %p81
        $region22: #{knowledge_distillation_loss.1} parent=15 // pred_check_branch
          %214 = sbr.rel (%p212) target = $region24
        $region23: #{knowledge_distillation_loss.1} parent=15 // pred_region
          %s215 = sand.u32 %s19, 1
          %s216 = scalar_lea.sflag [#allocation5], %s215
          %s217 = sand.u32 %s71, 1
          %s218 = smul.addr %s217, 64
          %s219 = scalar_lea.vmem [#allocation4], %s218
          %s220 = smul.u32 2, %s27
          %222 = vsyncadd %s216, 0
          %s223 = smul.addr %s26, 8
          %s224 = sadd.s32 %s220, %s223
          %s225 = smul.addr %s224, 8
          %s226 = scalar_lea.hbm %s1, %s225
          %s227 = sshll.u32 %s226, 4
          %s228 = int_to_ptr.hbm [resolvable:$true] %s227
          %s229 = sshll.u32 %s219, 4
          %s230 = int_to_ptr.vmem [resolvable:$true] %s229
          %235 = dma.hbm_to_vmem [thread:$0]  %s228, 1024, %s230, %s216, 128, 128, 8
        $region24: #{knowledge_distillation_loss.1} parent=15 // pred_fallthru
          _
        // Predicated region
        $region25: #{knowledge_distillation_loss.1} parent=15 // pred_check
          %p236 = pneg %p109
        $region26: #{knowledge_distillation_loss.1} parent=15 // pred_check_branch
          %238 = sbr.rel (%p236) target = $region28
        $region27: #{knowledge_distillation_loss.1} parent=15 // pred_region
          %s239 = sand.u32 %s19, 1
          %s240 = scalar_lea.sflag [#allocation5], %s239
          %s241 = sand.u32 %s99, 1
          %s242 = smul.addr %s241, 16
          %s243 = scalar_lea.vmem [#allocation6], %s242
          %s244 = smul.u32 2, %s27
          %246 = vsyncadd %s240, 0
          %s247 = smul.addr %s26, 2
          %s248 = sadd.s32 %s244, %s247
          %s249 = smul.addr %s248, 8
          %s250 = scalar_lea.hbm %s2, %s249
          %s251 = sshll.u32 %s250, 4
          %s252 = int_to_ptr.hbm [resolvable:$true] %s251
          %s253 = sshll.u32 %s243, 4
          %s254 = int_to_ptr.vmem [resolvable:$true] %s253
          %259 = dma.hbm_to_vmem [thread:$0]  %s252, 256, %s254, %s240, 128, 128, 8
        $region28: #{knowledge_distillation_loss.1} parent=15 // pred_fallthru
          _
        // Predicated region
        $region29: #{knowledge_distillation_loss.1} parent=15 // pred_check
          %p260 = pneg %p137
        $region30: #{knowledge_distillation_loss.1} parent=15 // pred_check_branch
          %262 = sbr.rel (%p260) target = $region32
        $region31: #{knowledge_distillation_loss.1} parent=15 // pred_region
          %s263 = sand.u32 %s127, 1
          %s264 = scalar_lea.sflag [#allocation8], %s263
          %s265 = sand.u32 %s127, 1
          %s266 = smul.addr %s265, 16
          %s267 = scalar_lea.vmem [#allocation7], %s266
          %s268 = smul.u32 2, %s27
          %270 = vsyncadd %s264, 0
          %s271 = smul.addr %s26, 2
          %s272 = sadd.s32 %s268, %s271
          %s273 = smul.addr %s272, 8
          %s274 = scalar_lea.hbm %s3, %s273
          %s275 = sshll.u32 %s274, 4
          %s276 = int_to_ptr.hbm [resolvable:$true] %s275
          %s277 = sshll.u32 %s267, 4
          %s278 = int_to_ptr.vmem [resolvable:$true] %s277
          %283 = dma.hbm_to_vmem [thread:$0]  %s276, 256, %s278, %s264, 128, 128, 8
        $region32: #{knowledge_distillation_loss.1} parent=15 // pred_fallthru
          _
      $region16: #{knowledge_distillation_loss.1} parent=5 // pred_fallthru
        _
      %p284 = scmp.le.s32.totalorder 1, %s19
      %p285 = scmp.lt.s32.totalorder %s19, 3
      %p286 = pnand %p284, %p285
      %p287 = pneg %p286
      // Predicated region
      $region33: #{knowledge_distillation_loss.1} parent=5 // pred_check
        _
      $region34: #{knowledge_distillation_loss.1} parent=5 // pred_check_branch
        %289 = sbr.rel (%p286) target = $region36
      $region35: #{knowledge_distillation_loss.1} parent=5 // pred_region
        %s290 = ssub.s32 %s19, 1
        %s291 = sand.u32 %s46, 1
        %s292 = scalar_lea.sflag [#allocation3], %s291
        %s293 = sand.u32 %s46, 1
        %s294 = smul.addr %s293, 64
        %s295 = scalar_lea.vmem [#allocation2], %s294
        // Predicated region
        $region37: #{knowledge_distillation_loss.1} parent=35 // pred_check
          %p296 = pneg %p59
        $region38: #{knowledge_distillation_loss.1} parent=35 // pred_check_branch
          %298 = sbr.rel (%p296) target = $region40
        $region39: #{knowledge_distillation_loss.1} parent=35 // pred_region
          %300 = dma.done %s292, 1024
        $region40: #{knowledge_distillation_loss.1} parent=35 // pred_fallthru
          _
        %s301 = sand.u32 %s24, 1
        %s302 = scalar_lea.sflag [#allocation5], %s301
        %s303 = sand.u32 %s74, 1
        %s304 = smul.addr %s303, 64
        %s305 = scalar_lea.vmem [#allocation4], %s304
        // Predicated region
        $region41: #{knowledge_distillation_loss.1} parent=35 // pred_check
          %p306 = pneg %p87
        $region42: #{knowledge_distillation_loss.1} parent=35 // pred_check_branch
          %308 = sbr.rel (%p306) target = $region44
        $region43: #{knowledge_distillation_loss.1} parent=35 // pred_region
          %310 = dma.done %s302, 1024
        $region44: #{knowledge_distillation_loss.1} parent=35 // pred_fallthru
          _
        %s311 = sand.u32 %s24, 1
        %s312 = scalar_lea.sflag [#allocation5], %s311
        %s313 = sand.u32 %s102, 1
        %s314 = smul.addr %s313, 16
        %s315 = scalar_lea.vmem [#allocation6], %s314
        // Predicated region
        $region45: #{knowledge_distillation_loss.1} parent=35 // pred_check
          %p316 = pneg %p115
        $region46: #{knowledge_distillation_loss.1} parent=35 // pred_check_branch
          %318 = sbr.rel (%p316) target = $region48
        $region47: #{knowledge_distillation_loss.1} parent=35 // pred_region
          %320 = dma.done %s312, 256
        $region48: #{knowledge_distillation_loss.1} parent=35 // pred_fallthru
          _
        %s321 = sand.u32 %s130, 1
        %s322 = scalar_lea.sflag [#allocation8], %s321
        %s323 = sand.u32 %s130, 1
        %s324 = smul.addr %s323, 16
        %s325 = scalar_lea.vmem [#allocation7], %s324
        // Predicated region
        $region49: #{knowledge_distillation_loss.1} parent=35 // pred_check
          %p326 = pneg %p143
        $region50: #{knowledge_distillation_loss.1} parent=35 // pred_check_branch
          %328 = sbr.rel (%p326) target = $region52
        $region51: #{knowledge_distillation_loss.1} parent=35 // pred_region
          %330 = dma.done %s322, 256
        $region52: #{knowledge_distillation_loss.1} parent=35 // pred_fallthru
          _
        %s331 = sand.u32 %s46, 1
        %s332 = scalar_lea.sflag [#allocation3], %s331
        %s333 = sand.u32 %s46, 1
        %s334 = smul.addr %s333, 64
        %s335 = scalar_lea.vmem [#allocation2], %s334
        %p336 = pneg %p59
        %p337 = pneg %p56
        %s338 = sand.u32 %s24, 1
        %s339 = scalar_lea.sflag [#allocation5], %s338
        %s340 = sand.u32 %s74, 1
        %s341 = smul.addr %s340, 64
        %s342 = scalar_lea.vmem [#allocation4], %s341
        %p343 = pneg %p87
        %p344 = pneg %p84
        %s345 = sand.u32 %s24, 1
        %s346 = scalar_lea.sflag [#allocation5], %s345
        %s347 = sand.u32 %s102, 1
        %s348 = smul.addr %s347, 16
        %s349 = scalar_lea.vmem [#allocation6], %s348
        %p350 = pneg %p115
        %p351 = pneg %p112
        %s352 = sand.u32 %s130, 1
        %s353 = scalar_lea.sflag [#allocation8], %s352
        %s354 = sand.u32 %s130, 1
        %s355 = smul.addr %s354, 16
        %s356 = scalar_lea.vmem [#allocation7], %s355
        %p357 = pneg %p143
        %p358 = pneg %p140
        %p359 = pneg %p169
        %p360 = pneg %p166
        %p361 = scmp.lt.s32.totalorder %s28, 1
        %s362 = scalar_select %p361, %s28, 1
        %s363 = smul.addr %s362, 2
        %s364 = smul.addr %s363, 8
        %s365 = scalar_lea.vmem %s4, %s364
        %s366 = smul.u32 2, %s29
        %s367 = smul.u32 2, %s29
        %s368 = smul.u32 2, %s29
        %s369 = smul.u32 2, %s29
        %p370 = scmp.lt.s32.totalorder %s28, 1
        %s371 = scalar_select %p370, %s28, 1
        %s372 = smul.addr %s371, 2
        %s373 = smul.addr %s372, 8
        %s374 = scalar_lea.vmem %s4, %s373
        %v375 = vld [vmem:[%s295] sm:$0xff]
        %v376 = vld [vmem:[%s295 + $0x8] sm:$0xff]
        %v377 = vld [vmem:[%s295 + $0x10] sm:$0xff]
        %v378 = vld [vmem:[%s295 + $0x18] sm:$0xff]
        %v379 = vld [vmem:[%s295 + $0x20] sm:$0xff]
        %v380 = vld [vmem:[%s295 + $0x28] sm:$0xff]
        %v381 = vld [vmem:[%s295 + $0x30] sm:$0xff]
        %v382 = vld [vmem:[%s295 + $0x38] sm:$0xff]
        %v383 = vld [vmem:[%s305] sm:$0xff]
        %v384 = vld [vmem:[%s305 + $0x8] sm:$0xff]
        %v385 = vld [vmem:[%s305 + $0x10] sm:$0xff]
        %v386 = vld [vmem:[%s305 + $0x18] sm:$0xff]
        %v387 = vld [vmem:[%s305 + $0x20] sm:$0xff]
        %v388 = vld [vmem:[%s305 + $0x28] sm:$0xff]
        %v389 = vld [vmem:[%s305 + $0x30] sm:$0xff]
        %v390 = vld [vmem:[%s305 + $0x38] sm:$0xff]
        %vm391 = vcmask 130048
        %v392 = vsel %vm391, %v375, -inf
        %v393 = vsel %vm391, %v377, -inf
        %v394 = vsel %vm391, %v379, -inf
        %v395 = vmax.f32 %v392, %v394
        %v396 = vsel %vm391, %v381, -inf
        %v397 = vmax.f32 %v393, %v396
        %v398 = vmax.f32 %v395, %v397
        %v399 = vsel %vm391, %v376, -inf
        %v400 = vsel %vm391, %v378, -inf
        %v401 = vsel %vm391, %v380, -inf
        %v402 = vmax.f32 %v399, %v401
        %v403 = vsel %vm391, %v382, -inf
        %v404 = vmax.f32 %v400, %v403
        %v405 = vmax.f32 %v402, %v404
        %v406 = vsub.f32 %v375, %v398
        %v407 = vsub.f32 %v376, %v405
        %v408 = vsub.f32 %v377, %v398
        %v409 = vsub.f32 %v378, %v405
        %v410 = vsub.f32 %v379, %v398
        %v411 = vsub.f32 %v380, %v405
        %v412 = vsub.f32 %v381, %v398
        %v413 = vsub.f32 %v382, %v405
        %v414 = vmul.f32 %v406, 1.442695
        %v415 = vpow.pop %v414
        %v416 = vmul.f32 %v407, 1.442695
        %v417 = vpow.pop %v416
        %v418 = vmul.f32 %v408, 1.442695
        %v419 = vpow.pop %v418
        %v420 = vmul.f32 %v409, 1.442695
        %v421 = vpow.pop %v420
        %v422 = vmul.f32 %v410, 1.442695
        %v423 = vpow.pop %v422
        %v424 = vmul.f32 %v411, 1.442695
        %v425 = vpow.pop %v424
        %v426 = vmul.f32 %v412, 1.442695
        %v427 = vpow.pop %v426
        %v428 = vmul.f32 %v413, 1.442695
        %v429 = vpow.pop %v428
        %v430 = vsel %vm391, %v415, 0.0
        %v431 = vsel %vm391, %v419, 0.0
        %v432 = vadd.f32 %v430, %v431
        %v433 = vsel %vm391, %v423, 0.0
        %v434 = vadd.f32 %v432, %v433
        %v435 = vsel %vm391, %v427, 0.0
        %v436 = vadd.f32 %v434, %v435
        %v437 = vsel %vm391, %v417, 0.0
        %v438 = vsel %vm391, %v421, 0.0
        %v439 = vadd.f32 %v437, %v438
        %v440 = vsel %vm391, %v425, 0.0
        %v441 = vadd.f32 %v439, %v440
        %v442 = vsel %vm391, %v429, 0.0
        %v443 = vadd.f32 %v441, %v442
        %v444 = vlog2.pop %v436
        %v445 = vmul.f32 %v444, 0.6931472
        %v446 = vlog2.pop %v443
        %v447 = vmul.f32 %v446, 0.6931472
        %v448 = vsel %vm391, %v383, -inf
        %v449 = vsel %vm391, %v385, -inf
        %v450 = vsel %vm391, %v387, -inf
        %v451 = vmax.f32 %v448, %v450
        %v452 = vsel %vm391, %v389, -inf
        %v453 = vmax.f32 %v449, %v452
        %v454 = vmax.f32 %v451, %v453
        %v455 = vsel %vm391, %v384, -inf
        %v456 = vsel %vm391, %v386, -inf
        %v457 = vsel %vm391, %v388, -inf
        %v458 = vmax.f32 %v455, %v457
        %v459 = vsel %vm391, %v390, -inf
        %v460 = vmax.f32 %v456, %v459
        %v461 = vmax.f32 %v458, %v460
        %v462 = vsub.f32 %v383, %v454
        %v463 = vsub.f32 %v384, %v461
        %v464 = vsub.f32 %v385, %v454
        %v465 = vsub.f32 %v386, %v461
        %v466 = vsub.f32 %v387, %v454
        %v467 = vsub.f32 %v388, %v461
        %v468 = vsub.f32 %v389, %v454
        %v469 = vsub.f32 %v390, %v461
        %v470 = vmul.f32 %v462, 1.442695
        %v471 = vpow.pop %v470
        %v472 = vmul.f32 %v463, 1.442695
        %v473 = vpow.pop %v472
        %v474 = vmul.f32 %v464, 1.442695
        %v475 = vpow.pop %v474
        %v476 = vmul.f32 %v465, 1.442695
        %v477 = vpow.pop %v476
        %v478 = vmul.f32 %v466, 1.442695
        %v479 = vpow.pop %v478
        %v480 = vmul.f32 %v467, 1.442695
        %v481 = vpow.pop %v480
        %v482 = vmul.f32 %v468, 1.442695
        %v483 = vpow.pop %v482
        %v484 = vmul.f32 %v469, 1.442695
        %v485 = vpow.pop %v484
        %v486 = vsel %vm391, %v471, 0.0
        %v487 = vsel %vm391, %v475, 0.0
        %v488 = vadd.f32 %v486, %v487
        %v489 = vsel %vm391, %v479, 0.0
        %v490 = vadd.f32 %v488, %v489
        %v491 = vsel %vm391, %v483, 0.0
        %v492 = vadd.f32 %v490, %v491
        %v493 = vsel %vm391, %v473, 0.0
        %v494 = vsel %vm391, %v477, 0.0
        %v495 = vadd.f32 %v493, %v494
        %v496 = vsel %vm391, %v481, 0.0
        %v497 = vadd.f32 %v495, %v496
        %v498 = vsel %vm391, %v485, 0.0
        %v499 = vadd.f32 %v497, %v498
        %v500 = vmul.f32 %v406, %v471
        %v501 = vmul.f32 %v407, %v473
        %v502 = vmul.f32 %v408, %v475
        %v503 = vmul.f32 %v409, %v477
        %v504 = vmul.f32 %v410, %v479
        %v505 = vmul.f32 %v411, %v481
        %v506 = vmul.f32 %v412, %v483
        %v507 = vmul.f32 %v413, %v485
        %v508 = vsel %vm391, %v500, 0.0
        %v509 = vsel %vm391, %v502, 0.0
        %v510 = vadd.f32 %v508, %v509
        %v511 = vsel %vm391, %v504, 0.0
        %v512 = vadd.f32 %v510, %v511
        %v513 = vsel %vm391, %v506, 0.0
        %v514 = vadd.f32 %v512, %v513
        %v515 = vsel %vm391, %v501, 0.0
        %v516 = vsel %vm391, %v503, 0.0
        %v517 = vadd.f32 %v515, %v516
        %v518 = vsel %vm391, %v505, 0.0
        %v519 = vadd.f32 %v517, %v518
        %v520 = vsel %vm391, %v507, 0.0
        %v521 = vadd.f32 %v519, %v520
        %v522 = vrcp.pop %v492
        %v523 = vmul.f32 %v492, %v522
        %v524 = vsub.f32 1.0, %v523
        %v525 = vmul.f32 %v522, %v524
        %v526 = vadd.f32 %v522, %v525
        %vm527 = vweird.f32 %v492
        %vm528 = vweird.f32 %v522
        %vm529 = vmor %vm527, %vm528
        %v530 = vsel %vm529, %v522, %v526
        %v531 = vand.u32 2147483647, %v492
        %vm532 = vcmp.eq.f32.partialorder %v531, 8.507059e+37
        %v533 = vand.u32 %v492, 2147483648
        %v534 = vor.u32 1.1754944e-38, %v533
        %v535 = vsel %vm532, %v534, %v530
        %v536 = vmul.f32 %v514, %v535
        %v537 = vrcp.pop %v499
        %v538 = vmul.f32 %v499, %v537
        %v539 = vsub.f32 1.0, %v538
        %v540 = vmul.f32 %v537, %v539
        %v541 = vadd.f32 %v537, %v540
        %vm542 = vweird.f32 %v499
        %vm543 = vweird.f32 %v537
        %vm544 = vmor %vm542, %vm543
        %v545 = vsel %vm544, %v537, %v541
        %v546 = vand.u32 2147483647, %v499
        %vm547 = vcmp.eq.f32.partialorder %v546, 8.507059e+37
        %v548 = vand.u32 %v499, 2147483648
        %v549 = vor.u32 1.1754944e-38, %v548
        %v550 = vsel %vm547, %v549, %v545
        %v551 = vmul.f32 %v521, %v550
        %v552 = vsub.f32 %v536, %v445
        %v553 = vsub.f32 %v551, %v447
        %v554 = vmul.f32 %v552, 0.25
        %v555 = vmul.f32 %v553, 0.25
        %v556 = vld [vmem:[%s315] sm:$0xff]
        %v557 = vld [vmem:[%s315 + $0x8] sm:$0xff]
        %v558 = vld [vmem:[%s325] sm:$0xff]
        %v559 = vld [vmem:[%s325 + $0x8] sm:$0xff]
        %v560 = vmul.f32 %v556, %v558
        %v561 = vmul.f32 %v557, %v559
        %v562 = vmul.f32 %v554, %v560
        %v563 = vmul.f32 %v555, %v561
        %p564 = scmp.eq.s32.totalorder %s29, 0
        // Predicated region
        $region53: #{knowledge_distillation_loss.1} parent=35 // pred_check
          %p565 = pneg %p564
        $region54: #{knowledge_distillation_loss.1} parent=35 // pred_check_branch
          %567 = sbr.rel (%p565) target = $region56
        $region55: #{knowledge_distillation_loss.1} parent=35 // pred_region
          %568 = vst.msk [vmem:[%s374] sm:$0xff] %vm391, %v562
          %569 = vst.msk [vmem:[%s374 + $0x8] sm:$0xff] %vm391, %v563
        $region56: #{knowledge_distillation_loss.1} parent=35 // pred_fallthru
          _
        %p570 = scmp.ne.s32.totalorder %s29, 0
        // Predicated region
        $region57: #{knowledge_distillation_loss.1} parent=35 // pred_check
          %p571 = pneg %p570
        $region58: #{knowledge_distillation_loss.1} parent=35 // pred_check_branch
          %573 = sbr.rel (%p571) target = $region60
        $region59: #{knowledge_distillation_loss.1} parent=35 // pred_region
          %v574 = vld [vmem:[%s374] sm:$0xff]
          %v575 = vld [vmem:[%s374 + $0x8] sm:$0xff]
          %v576 = vadd.f32 %v574, %v562
          %v577 = vadd.f32 %v575, %v563
          %578 = vst.msk [vmem:[%s374] sm:$0xff] %vm391, %v576
          %579 = vst.msk [vmem:[%s374 + $0x8] sm:$0xff] %vm391, %v577
        $region60: #{knowledge_distillation_loss.1} parent=35 // pred_fallthru
          _
        %p580 = scmp.lt.s32.totalorder %s28, 1
        %s581 = scalar_select %p580, %s28, 1
        %s582 = smul.addr %s581, 2
        %s583 = smul.addr %s582, 8
        %s584 = scalar_lea.vmem %s4, %s583
        // Predicated region
        $region61: #{knowledge_distillation_loss.1} parent=35 // pred_check
          %p585 = pneg %p166
        $region62: #{knowledge_distillation_loss.1} parent=35 // pred_check_branch
          %587 = sbr.rel (%p585) target = $region64
        $region63: #{knowledge_distillation_loss.1} parent=35 // pred_region
          _
        $region64: #{knowledge_distillation_loss.1} parent=35 // pred_fallthru
          _
      $region36: #{knowledge_distillation_loss.1} parent=5 // pred_fallthru
        _
      %p588 = scmp.le.s32.totalorder 2, %s19
      // Predicated region
      $region65: #{knowledge_distillation_loss.1} parent=5 // pred_check
        %p589 = pneg %p588
      $region66: #{knowledge_distillation_loss.1} parent=5 // pred_check_branch
        %591 = sbr.rel (%p589) target = $region68
      $region67: #{knowledge_distillation_loss.1} parent=5 // pred_region
        %s592 = ssub.s32 %s19, 2
        // Predicated region
        $region69: #{knowledge_distillation_loss.1} parent=67 // pred_check
          %p593 = pneg %p172
        $region70: #{knowledge_distillation_loss.1} parent=67 // pred_check_branch
          %595 = sbr.rel (%p593) target = $region72
        $region71: #{knowledge_distillation_loss.1} parent=67 // pred_region
          %p596 = scmp.lt.s32.totalorder %s30, 1
          %s597 = scalar_select %p596, %s30, 1
          %s598 = smul.addr %s597, 2
          %s599 = smul.addr %s598, 8
          %s600 = scalar_lea.vmem %s4, %s599
        $region72: #{knowledge_distillation_loss.1} parent=67 // pred_fallthru
          _
      $region68: #{knowledge_distillation_loss.1} parent=5 // pred_fallthru
        _
    $region6: #{knowledge_distillation_loss.1} parent=1 // loop_footer
      %s23 = sadd.s32 1, %s19
    $region7: #{knowledge_distillation_loss.1} parent=1 // loop_footer_branch
      %18 = sbr.rel target = $region3
    $region8: #{knowledge_distillation_loss.1} parent=1 // loop_exit
      _
    %601 = vsyncpa [#allocation3], 1
    %s602 = scalar_lea.sflag [#allocation3], 1
    %603 = vsyncpa %s602, 1
    %604 = vsyncpa [#allocation5], 1
    %s605 = scalar_lea.sflag [#allocation5], 1
    %606 = vsyncpa %s605, 1
    %607 = vsyncpa [#allocation8], 1
    %s608 = scalar_lea.sflag [#allocation8], 1
    %609 = vsyncpa %s608, 1

</llo_original>
